<compile_context>
chip_gen: v7x
topology: tpu7x:2x2x1
jax: 0.10.0
libtpu: 0.0.40
codegen_flags: <defaults>
</compile_context>

<pallas_src>
import functools

import jax
import jax.numpy as jnp
from jax.experimental import pallas as pl
from jax.experimental.pallas import tpu as pltpu


def _actnorm_kernel(x_ref, bias_ref, log_ref, y_ref, *, reverse):
    # x_ref:    (RB, HW)  VMEM  (rows = flattened N*C)
    # bias_ref: (RB, 1)   VMEM  (per-row bias, already expanded over N)
    # log_ref:  (RB, 1)   VMEM
    # y_ref:    (RB, HW)  VMEM
    log = log_ref[...]        # (RB, 1)
    bias = bias_ref[...]      # (RB, 1)
    x = x_ref[...]            # (RB, HW)

    if reverse:
        scale = jnp.exp(-log)             # EUP exp on the narrow (RB, 1) tile
        y_ref[...] = scale * x - bias     # broadcast along lanes only
    else:
        scale = jnp.exp(log)              # EUP exp on the narrow (RB, 1) tile
        y_ref[...] = scale * (x + bias)


def _choose_row_block(nc, hw):
    """Row-block size: multiple of 8, x-tile ~<= 2 MiB f32 (v7x VMEM-safe)."""
    if nc <= 8:
        return nc  # full dim — allowed even if < 8
    target_rows = max(8, (2 * 1024 * 1024) // (hw * 4))
    rb = min(nc, (target_rows // 8) * 8)
    return max(rb, 8)


def actnorm_forward(x_nchw, bias, log, log_det=None, reverse=False,
                    non_return_det=False):
    """Pallas equivalent of Actnorm.forward (inited=True).

    x_nchw: (N, C, H, W) float32
    bias, log: (1, C, 1, 1) float32 (PyTorch parameter shapes)
    """
    N, C, H, W = x_nchw.shape
    HW = H * W
    NC = N * C

    x = x_nchw.reshape(NC, HW).astype(jnp.float32)

    # Per-channel params expanded to per-row (N*C, 1): row n*C + c holds param[c].
    b_c = bias.reshape(C).astype(jnp.float32)
    lg_c = log.reshape(C).astype(jnp.float32)
    b = jnp.tile(b_c, N).reshape(NC, 1)
    lg = jnp.tile(lg_c, N).reshape(NC, 1)

    rb = _choose_row_block(NC, HW)
    grid = (pl.cdiv(NC, rb),)

    kernel = functools.partial(_actnorm_kernel, reverse=reverse)

    y = pl.pallas_call(
        kernel,
        out_shape=jax.ShapeDtypeStruct((NC, HW), jnp.float32),
        grid_spec=pl.GridSpec(
            grid=grid,
            in_specs=[
                pl.BlockSpec((rb, HW), lambda i: (i, 0)),
                pl.BlockSpec((rb, 1), lambda i: (i, 0)),
                pl.BlockSpec((rb, 1), lambda i: (i, 0)),
            ],
            out_specs=pl.BlockSpec((rb, HW), lambda i: (i, 0)),
        ),
        compiler_params=pltpu.CompilerParams(
            dimension_semantics=("parallel",)),
    )(x, b, lg)

    y = y.reshape(N, C, H, W)

    # slogdet is a tiny (C,)-scalar reduction — keep it in plain JAX (f32).
    slogdet = jnp.sum(lg_c) * jnp.float32(HW)
    if reverse:
        slogdet = -slogdet
    base = jnp.float32(0.0) if log_det is None else jnp.asarray(log_det, jnp.float32)
    log_det_out = base + slogdet

    if non_return_det:
        return y
    return y, log_det_out


def _reference_forward(x, bias, log, log_det=None, reverse=False):
    """Plain-JAX transcription of the PyTorch forward for verification."""
    if log_det is None:
        log_det = 0.0
    _, _, h, w = x.shape
    slogdet = jnp.sum(log) * h * w
    if reverse:
        y = jnp.exp(-log) * x - bias
        slogdet = -slogdet
    else:
        y = jnp.exp(log) * (x + bias)
    return y, log_det + slogdet


if __name__ == "__main__":
    key = jax.random.PRNGKey(0)
    kx, kb, kl = jax.random.split(key, 3)

    N, C, H, W = 2, 4, 16, 16
    x = jax.random.normal(kx, (N, C, H, W), dtype=jnp.float32)
    # Parameter shapes from Actnorm.__init__: (1, feature_dim, 1, 1)
    bias = 0.1 * jax.random.normal(kb, (1, C, 1, 1), dtype=jnp.float32)
    log = 0.1 * jax.random.normal(kl, (1, C, 1, 1), dtype=jnp.float32)

    # forward
    y, log_det = actnorm_forward(x, bias, log, log_det=None, reverse=False)
    jax.block_until_ready(y)
    jax.block_until_ready(log_det)

    y_ref, ld_ref = _reference_forward(x, bias, log)
    assert jnp.allclose(y, y_ref, atol=1e-5, rtol=1e-5), "forward mismatch"
    assert jnp.allclose(log_det, ld_ref, atol=1e-4, rtol=1e-5), "log_det mismatch"

    # reverse path (sanity: should approximately invert forward on params/bias)
    y_rev, log_det_rev = actnorm_forward(y, bias, log, log_det=None, reverse=True)
    jax.block_until_ready(y_rev)
    y_rev_ref, ld_rev_ref = _reference_forward(y, bias, log, reverse=True)
    assert jnp.allclose(y_rev, y_rev_ref, atol=1e-5, rtol=1e-5), "reverse mismatch"
    assert jnp.allclose(log_det_rev, ld_rev_ref, atol=1e-4, rtol=1e-5), "reverse log_det mismatch"

    print("KERNEL_OK")
</pallas_src>

<mosaic_0001>
module attributes {stable_mosaic.version = 11 : i64} {
  func.func @_actnorm_kernel(%arg0: i32, %arg1: memref<8x256xf32, #tpu.memory_space<vmem>>, %arg2: memref<8x1xf32, #tpu.memory_space<vmem>>, %arg3: memref<8x1xf32, #tpu.memory_space<vmem>>, %arg4: memref<8x256xf32, #tpu.memory_space<vmem>>) attributes {dimension_semantics = [#tpu.dimension_semantics<parallel>], iteration_bounds = array<i64: 1>, scalar_prefetch = 0 : i64, scratch_operands = 0 : i64, tpu.core_type = #tpu.core_type<tc>, window_params = [{transform_indices = @transform_0, window_bounds = array<i64: 8, 256>}, {transform_indices = @transform_1, window_bounds = array<i64: 8, 1>}, {transform_indices = @transform_2, window_bounds = array<i64: 8, 1>}, {transform_indices = @transform_3, window_bounds = array<i64: 8, 256>}]} {
    %c0 = arith.constant 0 : index
    %c0_0 = arith.constant 0 : index
    %0 = vector.load %arg3[%c0, %c0_0] : memref<8x1xf32, #tpu.memory_space<vmem>>, vector<8x1xf32>
    %c0_1 = arith.constant 0 : index
    %c0_2 = arith.constant 0 : index
    %1 = vector.load %arg2[%c0_1, %c0_2] : memref<8x1xf32, #tpu.memory_space<vmem>>, vector<8x1xf32>
    %c0_3 = arith.constant 0 : index
    %c0_4 = arith.constant 0 : index
    %2 = vector.load %arg1[%c0_3, %c0_4] : memref<8x256xf32, #tpu.memory_space<vmem>>, vector<8x256xf32>
    %3 = math.exp %0 : vector<8x1xf32>
    %4 = vector.broadcast %1 : vector<8x1xf32> to vector<8x256xf32>
    %5 = arith.addf %2, %4 : vector<8x256xf32>
    %6 = vector.broadcast %3 : vector<8x1xf32> to vector<8x256xf32>
    %7 = arith.mulf %6, %5 : vector<8x256xf32>
    %c0_5 = arith.constant 0 : index
    %c0_6 = arith.constant 0 : index
    %8 = vector.load %arg4[%c0_5, %c0_6] : memref<8x256xf32, #tpu.memory_space<vmem>>, vector<8x256xf32>
    tpu.vector_store %arg4[%c0_5, %c0_6], %7 {strides = array<i32>} : memref<8x256xf32, #tpu.memory_space<vmem>>, vector<8x256xf32>,
    return
  }
  func.func @transform_0(%arg0: i32) -> (i32, i32) {
    %c0_i32 = arith.constant 0 : i32
    %c0_i32_0 = arith.constant 0 : i32
    return %arg0, %c0_i32 : i32, i32
  }
  func.func @transform_1(%arg0: i32) -> (i32, i32) {
    %c0_i32 = arith.constant 0 : i32
    %c0_i32_0 = arith.constant 0 : i32
    return %arg0, %c0_i32 : i32, i32
  }
  func.func @transform_2(%arg0: i32) -> (i32, i32) {
    %c0_i32 = arith.constant 0 : i32
    %c0_i32_0 = arith.constant 0 : i32
    return %arg0, %c0_i32 : i32, i32
  }
  func.func @transform_3(%arg0: i32) -> (i32, i32) {
    %c0_i32 = arith.constant 0 : i32
    %c0_i32_0 = arith.constant 0 : i32
    return %arg0, %c0_i32 : i32, i32
  }
}

</mosaic_0001>

<llo_original>
// kernel: tpu_custom_call.1
$region0: #{tpu_custom_call.1}
  #allocation0 [shape = 'u32[]', space=smem, size = 0x4, offset = 0x4, fixed_abs, tag = 'smem constant byte address 0x4 - core index']
  #allocation1 [shape = 'u32[144,128]{1,0:T(1,128)}', space=vmem, size = 0x12000, scoped, tag = 'internal scratch']
  %s0 = inlined_call_operand.vmem [shape: f32[8,256], index: 0, kind: input, shape index: {}]
  %s1 = inlined_call_operand.vmem [shape: f32[8,1], index: 1, kind: input, shape index: {}]
  %s2 = inlined_call_operand.vmem [shape: f32[8,1], index: 2, kind: input, shape index: {}]
  %s3 = inlined_call_operand.hbm [shape: f32[8,256], index: 3, kind: output, shape index: {}]
  %s4 = sld [smem:[#allocation0]]
  $region22: #{tpu_custom_call.1} parent=0
    _
  %s6 = ssub.s32 1, %s4
  %s7 = scalar_select 0, %s6, %s4
  $region1: #{tpu_custom_call.1} parent=0
    #allocation2 [shape = 'u8[8192]{0}', space=vmem, size = 0x2000, scoped, tag = 'output window, operand 0, single buffered']
    #allocation3 [shape = 's32[1]{0}', space=sflag, size = 0x4, scoped, tag = 'scoped memory for tpu_custom_call.1']
    %8 = vsyncpa [#allocation3], 0
    // Predicated region
    $region2: #{tpu_custom_call.1} parent=1 // pred_check
      _
    $region3: #{tpu_custom_call.1} parent=1 // pred_check_branch
      %10 = sbr.rel (0) target = $region5
    $region4: #{tpu_custom_call.1} parent=1 // pred_region
      _
    $region5: #{tpu_custom_call.1} parent=1 // pred_fallthru
      _
    // Predicated region
    $region6: #{tpu_custom_call.1} parent=1 // pred_check
      _
    $region7: #{tpu_custom_call.1} parent=1 // pred_check_branch
      %12 = sbr.rel (0) target = $region9
    $region8: #{tpu_custom_call.1} parent=1 // pred_region
      _
    $region9: #{tpu_custom_call.1} parent=1 // pred_fallthru
      _
    // Predicated region
    $region10: #{tpu_custom_call.1} parent=1 // pred_check
      _
    $region11: #{tpu_custom_call.1} parent=1 // pred_check_branch
      %14 = sbr.rel (0) target = $region13
    $region12: #{tpu_custom_call.1} parent=1 // pred_region
      _
    $region13: #{tpu_custom_call.1} parent=1 // pred_fallthru
      _
    %v15 = vld [vmem:[%s2] sm:$0xff]
    %v16 = vld [vmem:[%s1] sm:$0xff]
    %v17 = vld [vmem:[%s0] sm:$0xff]
    %v18 = vld [vmem:[%s0 + $0x8] sm:$0xff]
    %v19 = vmul.f32 %v15, 1.442695
    %v20 = vpow.pop %v19
    %22 = vset.pattern.permute.xlu0 0
    %23 = vperm.xlu0 %22, %v16
    %v24 = vpop.permute.xlu0 %23
    %v26 = vadd.f32 %v17, %v24
    %v27 = vadd.f32 %v18, %v24
    %29 = vset.pattern.permute.xlu0 0
    %30 = vperm.xlu0 %29, %v20
    %v31 = vpop.permute.xlu0 %30
    %v33 = vmul.f32 %v31, %v26
    %v34 = vmul.f32 %v31, %v27
    %35 = vst [vmem:[#allocation2] sm:$0xff] %v33
    %36 = vst [vmem:[#allocation2 + $0x8] sm:$0xff] %v34
    // Predicated region
    $region14: #{tpu_custom_call.1} parent=1 // pred_check
      _
    $region15: #{tpu_custom_call.1} parent=1 // pred_check_branch
      %38 = sbr.rel (0) target = $region17
    $region16: #{tpu_custom_call.1} parent=1 // pred_region
      %s40 = ssub.s32 256, 256
      %41 = vsyncadd [#allocation3], %s40
      %s43 = sshll.u32 [#allocation2], 4
      %s44 = int_to_ptr.vmem [resolvable:$true] %s43
      %46 = dma.vmem_to_hbm [thread:$0]  %s44, 256, %s3, [#allocation3]
    $region17: #{tpu_custom_call.1} parent=1 // pred_fallthru
      _
    // Predicated region
    $region18: #{tpu_custom_call.1} parent=1 // pred_check
      _
    $region19: #{tpu_custom_call.1} parent=1 // pred_check_branch
      %48 = sbr.rel (0) target = $region21
    $region20: #{tpu_custom_call.1} parent=1 // pred_region
      %49 = dma.done [#allocation3], 256
    $region21: #{tpu_custom_call.1} parent=1 // pred_fallthru
      _
    %50 = vsyncpa [#allocation3], 1

</llo_original>
